<compile_context>
chip_gen: v6e
topology: v6e:2x2x1
jax: 0.10.0
libtpu: 0.0.40
codegen_flags: <defaults>
</compile_context>

<pallas_src>
import functools

import jax
import jax.numpy as jnp
from jax.experimental import pallas as pl
from jax.experimental.pallas import tpu as pltpu


def _contrastive_loss_tile_kernel(x_ref, p_ref, *, n_rows, tile_rows):
    """One row tile: partial sum of (logsumexp(x) - x[:, 0]) over valid rows."""
    i = pl.program_id(0)

    x = x_ref[...]                                      # (TN, C), input dtype

    # Row max / shift / exp in the input dtype (bf16 VPU/EUP on v6e/v7x,
    # upcast automatically on v5e).  The row max is exact in any dtype.
    m = jnp.max(x, axis=-1, keepdims=True)              # (TN, 1)
    e = jnp.exp(x - m)                                  # (TN, C)

    # Accumulate the sum-of-exp, the log and the final combine in f32.
    se = jnp.sum(e.astype(jnp.float32), axis=-1, keepdims=True)     # (TN, 1)
    x0 = x[:, 0:1].astype(jnp.float32)                  # positive logit, lane 0
    row_loss = m.astype(jnp.float32) + jnp.log(se) - x0              # (TN, 1)

    # Mask rows past the true batch size (partial last tile reads padding).
    row_ids = i * tile_rows + jax.lax.broadcasted_iota(
        jnp.int32, row_loss.shape, 0)
    row_loss = jnp.where(row_ids < n_rows, row_loss, 0.0)

    # Lane-dense, unmasked full-vreg store: 1024 copies of the partial sum.
    p_ref[...] = jnp.broadcast_to(jnp.sum(row_loss), p_ref.shape)


def _pick_row_tile(n: int, c: int, itemsize: int) -> int:
    """Row tile sized by bytes; a multiple of 8 (or the full batch)."""
    row_bytes = max(1, c * itemsize)
    # ~4 MiB of input per double-buffered buffer for f32; ~2 MiB for narrower
    # dtypes (leaves room for the widened f32 temporaries).
    budget = (4 if itemsize >= 4 else 2) * 1024 * 1024
    tn = max(8, (budget // row_bytes) // 8 * 8)

    # Force >= 2 grid steps once the input is big enough that the extra step
    # overhead is noise, so the "parallel" axis shards across both v7x cores.
    if n > 8 and n * row_bytes > 2 * 1024 * 1024:
        half = max(8, ((n + 1) // 2 + 7) // 8 * 8)   # ceil(n/2) -> multiple of 8
        tn = min(tn, half)

    if tn >= n:
        return n     # single tile: block == full array (always a legal block)
    return tn        # multiple of 8 -> satisfies the (8, 128) block rule


def _reference_loss(inputs, reduction):
    x = inputs.astype(jnp.float32)
    per_row = jax.nn.logsumexp(x, axis=-1) - x[:, 0]
    return jnp.sum(per_row) if reduction == 'sum' else jnp.mean(per_row)


def contrastive_loss(inputs: jax.Array, *, reduction: str = 'mean',
                     force_pallas: bool = False) -> jax.Array:
    """Pallas implementation of ContrastiveLoss(reduction).forward."""
    assert inputs.ndim == 2, "expected (N, num_classes) logits"
    assert reduction in ('mean', 'sum')
    n, c = inputs.shape
    itemsize = inputs.dtype.itemsize

    # Small-input fast path: a fused XLA reduce beats the fixed pallas_call
    # and per-grid-step overhead at these sizes.
    if not force_pallas and n * c * itemsize < 256 * 1024:
        return _reference_loss(inputs, reduction)

    tn = _pick_row_tile(n, c, itemsize)
    num_tiles = pl.cdiv(n, tn)

    kernel = functools.partial(
        _contrastive_loss_tile_kernel, n_rows=n, tile_rows=tn)

    cost = pl.CostEstimate(
        flops=3 * n * c,                       # max, subtract, sum
        transcendentals=n * c + n,             # exp per element, log per row
        bytes_accessed=n * c * itemsize + num_tiles * 8 * 128 * 4,
    )

    partials = pl.pallas_call(
        kernel,
        out_shape=jax.ShapeDtypeStruct((num_tiles, 8, 128), jnp.float32),
        grid=(num_tiles,),
        in_specs=[pl.BlockSpec((tn, c), lambda i: (i, 0))],
        out_specs=pl.BlockSpec((1, 8, 128), lambda i: (i, 0, 0)),
        compiler_params=pltpu.CompilerParams(
            dimension_semantics=("parallel",),
            vmem_limit_bytes=48 * 1024 * 1024,
        ),
        cost_estimate=cost,
    )(inputs)

    # Every (8, 128) block holds 1024 copies of its tile's partial sum, so one
    # contiguous lane-dense reduce recovers 1024 * sum_of_partials.
    total = jnp.sum(partials) * (1.0 / 1024.0)
    return total if reduction == 'sum' else total / jnp.float32(n)


if __name__ == "__main__":
    key = jax.random.PRNGKey(0)
    k0, k1, k2 = jax.random.split(key, 3)

    # 1) Tiny shape consistent with the module (batch of 8 rows, 32
    #    contrastive logits: positive at index 0, 31 negatives).  The auto
    #    path takes the small-input XLA branch; force_pallas exercises the
    #    kernel on a single full-array tile.
    n0, c0 = 8, 32
    x0 = jax.random.normal(k0, (n0, c0), dtype=jnp.float32)
    ref0 = jnp.mean(jax.nn.logsumexp(x0, axis=-1) - x0[:, 0])
    out_fast = contrastive_loss(x0)
    out_krn = contrastive_loss(x0, force_pallas=True)
    jax.block_until_ready((out_fast, out_krn))
    assert jnp.allclose(out_fast, ref0, atol=1e-5, rtol=1e-5), (out_fast, ref0)
    assert jnp.allclose(out_krn, ref0, atol=1e-4, rtol=1e-4), (out_krn, ref0)

    # 2) f32 above the fast-path threshold: single-tile kernel path.
    n1, c1 = 512, 256
    x1 = jax.random.normal(k1, (n1, c1), dtype=jnp.float32)
    ref1 = jnp.mean(jax.nn.logsumexp(x1, axis=-1) - x1[:, 0])
    out1 = contrastive_loss(x1)
    jax.block_until_ready(out1)
    assert jnp.allclose(out1, ref1, atol=1e-4, rtol=1e-4), (out1, ref1)

    # 3) bf16, > 2 MiB so the tile picker forces >= 2 grid steps, with a
    #    partial (masked) last tile since N is not a multiple of the tile.
    n2, c2 = 1030, 1024
    x2 = jax.random.normal(k2, (n2, c2), dtype=jnp.bfloat16)
    x2f = x2.astype(jnp.float32)
    ref2 = jnp.mean(jax.nn.logsumexp(x2f, axis=-1) - x2f[:, 0])
    out2 = contrastive_loss(x2)
    jax.block_until_ready(out2)
    assert jnp.allclose(out2, ref2, atol=2e-2, rtol=2e-2), (out2, ref2)

    print("KERNEL_OK")
</pallas_src>

<mosaic_0001>
module attributes {stable_mosaic.version = 11 : i64} {
  func.func @_contrastive_loss_tile_kernel(%arg0: i32, %arg1: memref<8x32xf32, #tpu.memory_space<vmem>>, %arg2: memref<1x8x128xf32, #tpu.memory_space<vmem>>) attributes {dimension_semantics = [#tpu.dimension_semantics<parallel>], iteration_bounds = array<i64: 1>, scalar_prefetch = 0 : i64, scratch_operands = 0 : i64, tpu.core_type = #tpu.core_type<tc>, window_params = [{transform_indices = @transform_0, window_bounds = array<i64: 8, 32>}, {transform_indices = @transform_1, window_bounds = array<i64: 1, 8, 128>}]} {
    %c0 = arith.constant 0 : index
    %c0_0 = arith.constant 0 : index
    %0 = vector.load %arg1[%c0, %c0_0] : memref<8x32xf32, #tpu.memory_space<vmem>>, vector<8x32xf32>
    %cst = arith.constant dense<0xFF800000> : vector<8xf32>
    %1 = vector.multi_reduction <maximumf>, %0, %cst [1] : vector<8x32xf32> to vector<8xf32>
    %2 = vector.shape_cast %1 : vector<8xf32> to vector<8x1xf32>
    %3 = vector.broadcast %2 : vector<8x1xf32> to vector<8x32xf32>
    %4 = arith.subf %0, %3 : vector<8x32xf32>
    %5 = math.exp %4 : vector<8x32xf32>
    %cst_1 = arith.constant dense<0.000000e+00> : vector<8xf32>
    %6 = vector.multi_reduction <add>, %5, %cst_1 [1] : vector<8x32xf32> to vector<8xf32>
    %7 = vector.shape_cast %6 : vector<8xf32> to vector<8x1xf32>
    %8 = vector.extract_strided_slice %0 {offsets = [0, 0], sizes = [8, 1], strides = [1, 1]} : vector<8x32xf32> to vector<8x1xf32>
    %9 = math.log %7 : vector<8x1xf32>
    %10 = arith.addf %2, %9 : vector<8x1xf32>
    %11 = arith.subf %10, %8 : vector<8x1xf32>
    %c8_i32 = arith.constant 8 : i32
    %12 = arith.muli %arg0, %c8_i32 : i32
    %13 = tpu.iota {dimensions = array<i32: 0>} : vector<8x1xi32>
    %14 = vector.broadcast %12 : i32 to vector<8x1xi32>
    %15 = arith.addi %14, %13 : vector<8x1xi32>
    %c8_i32_2 = arith.constant 8 : i32
    %16 = vector.broadcast %c8_i32_2 : i32 to vector<8x1xi32>
    %17 = arith.cmpi slt, %15, %16 : vector<8x1xi32>
    %cst_3 = arith.constant 0.000000e+00 : f32
    %18 = vector.broadcast %cst_3 : f32 to vector<8x1xf32>
    %19 = arith.select %17, %11, %18 : vector<8x1xi1>, vector<8x1xf32>
    %20 = vector.shape_cast %19 : vector<8x1xf32> to vector<1x8x1xf32>
    %cst_4 = arith.constant dense<0.000000e+00> : vector<1xf32>
    %21 = vector.multi_reduction <add>, %20, %cst_4 [1, 2] : vector<1x8x1xf32> to vector<1xf32>
    %22 = vector.shape_cast %21 : vector<1xf32> to vector<1x1x1xf32>
    %23 = vector.extract %22[0, 0, 0] : f32 from vector<1x1x1xf32>
    %24 = vector.broadcast %23 : f32 to vector<1x8x128xf32>
    %c0_5 = arith.constant 0 : index
    %c0_6 = arith.constant 0 : index
    %c0_7 = arith.constant 0 : index
    %25 = vector.load %arg2[%c0_5, %c0_6, %c0_7] : memref<1x8x128xf32, #tpu.memory_space<vmem>>, vector<1x8x128xf32>
    tpu.vector_store %arg2[%c0_5, %c0_6, %c0_7], %24 {strides = array<i32>} : memref<1x8x128xf32, #tpu.memory_space<vmem>>, vector<1x8x128xf32>,
    return
  }
  func.func @transform_0(%arg0: i32) -> (i32, i32) {
    %c0_i32 = arith.constant 0 : i32
    %c0_i32_0 = arith.constant 0 : i32
    return %arg0, %c0_i32 : i32, i32
  }
  func.func @transform_1(%arg0: i32) -> (i32, i32, i32) {
    %c0_i32 = arith.constant 0 : i32
    %c0_i32_0 = arith.constant 0 : i32
    %c0_i32_1 = arith.constant 0 : i32
    return %arg0, %c0_i32, %c0_i32_0 : i32, i32, i32
  }
}

</mosaic_0001>

<llo_original>
// kernel: tpu_custom_call.1
$region0: #{tpu_custom_call.1}
  #allocation0 [shape = 'u32[]', space=smem, size = 0x4, offset = 0x4, fixed_abs, tag = 'smem constant byte address 0x4 - core index']
  #allocation1 [shape = 'u32[144,128]{1,0:T(1,128)}', space=vmem, size = 0x12000, scoped, tag = 'internal scratch']
  %s0 = inlined_call_operand.hbm [shape: f32[8,32], index: 0, kind: input, shape index: {}]
  %s1 = inlined_call_operand.hbm [shape: f32[1,8,128], index: 1, kind: output, shape index: {}]
  %s2 = sld [smem:[#allocation0]]
  $region18: #{tpu_custom_call.1} parent=0
    _
  %s4 = ssub.s32 1, %s2
  %s5 = scalar_select 0, %s4, %s2
  $region1: #{tpu_custom_call.1} parent=0
    #allocation2 [shape = 'u8[4096]{0}', space=vmem, size = 0x1000, scoped, tag = 'input window, operand 0, single buffered']
    #allocation3 [shape = 's32[1]{0}', space=sflag, size = 0x4, scoped, tag = 'scoped memory for tpu_custom_call.1']
    #allocation4 [shape = 's32[1]{0}', space=sflag, size = 0x4, scoped, tag = 'scoped memory for tpu_custom_call.1']
    #allocation5 [shape = 'u8[4096]{0}', space=vmem, size = 0x1000, scoped, tag = 'output window, operand 0, single buffered']
    %6 = vsyncpa [#allocation3], 0
    %7 = vsyncpa [#allocation4], 0
    // Predicated region
    $region2: #{tpu_custom_call.1} parent=1 // pred_check
      _
    $region3: #{tpu_custom_call.1} parent=1 // pred_check_branch
      %9 = sbr.rel (0) target = $region5
    $region4: #{tpu_custom_call.1} parent=1 // pred_region
      %s11 = ssub.s32 128, 128
      %12 = vsyncadd [#allocation3], %s11
      %s14 = sshll.u32 [#allocation2], 4
      %s15 = int_to_ptr.vmem [resolvable:$true] %s14
      %17 = dma.hbm_to_vmem [thread:$0]  %s0, 128, %s15, [#allocation3]
    $region5: #{tpu_custom_call.1} parent=1 // pred_fallthru
      _
    // Predicated region
    $region6: #{tpu_custom_call.1} parent=1 // pred_check
      _
    $region7: #{tpu_custom_call.1} parent=1 // pred_check_branch
      %19 = sbr.rel (0) target = $region9
    $region8: #{tpu_custom_call.1} parent=1 // pred_region
      %20 = dma.done [#allocation3], 128
    $region9: #{tpu_custom_call.1} parent=1 // pred_fallthru
      _
    %v21 = vld [vmem:[#allocation2] sm:$0xff]
    %vm22 = vcmask 261120
    %v23 = vsel %vm22, %v21, -inf
    %24 = vmax.xlane.f32.xlu0 %v23
    %v25 = vpop.xlane.xlu0 %24
    %v26 = vsub.f32 %v21, %v25
    %v27 = vmul.f32 %v26, 1.442695
    %v28 = vpow.pop %v27
    %v29 = vsel %vm22, %v28, 0.0
    %30 = vadd.xlane.f32.xlu0 %v29
    %v31 = vpop.xlane.xlu0 %30
    %v32 = vlog2.pop %v31
    %v33 = vmul.f32 %v32, 0.6931472
    %v34 = vadd.f32 %v25, %v33
    %v35 = vsub.f32 %v34, %v21
    %s36 = smul.u32 0, 8
    %v37 = vlaneseq
    %v38 = vshrl.u32 %v37, 7
    %v39 = vstv %s36
    %v40 = vadd.s32 %v39, %v38
    %vm41 = vcmp.lt.s32.totalorder %v40, 8
    %v42 = vsel %vm41, %v35, 0.0
    %vm43 = vcmask 7168
    %v44 = vsel %vm43, %v42, 0.0
    %45 = vadd.xlane.f32.xlu0 %v44
    %v46 = vpop.xlane.xlu0 %45
    %v47 = vrot.slane %v46, 4
    %v48 = vadd.f32 %v46, %v47
    %v49 = vrot.slane %v48, 2
    %v50 = vadd.f32 %v48, %v49
    %v51 = vrot.slane %v50, 1
    %v52 = vadd.f32 %v50, %v51
    %s53 = vtos %v52
    %v54 = vstv %s53
    %55 = vst [vmem:[#allocation5] sm:$0xff] %v54
    // Predicated region
    $region10: #{tpu_custom_call.1} parent=1 // pred_check
      _
    $region11: #{tpu_custom_call.1} parent=1 // pred_check_branch
      %57 = sbr.rel (0) target = $region13
    $region12: #{tpu_custom_call.1} parent=1 // pred_region
      %s59 = ssub.s32 128, 128
      %60 = vsyncadd [#allocation4], %s59
      %s62 = sshll.u32 [#allocation5], 4
      %s63 = int_to_ptr.vmem [resolvable:$true] %s62
      %65 = dma.vmem_to_hbm [thread:$0]  %s63, 128, %s1, [#allocation4]
    $region13: #{tpu_custom_call.1} parent=1 // pred_fallthru
      _
    // Predicated region
    $region14: #{tpu_custom_call.1} parent=1 // pred_check
      _
    $region15: #{tpu_custom_call.1} parent=1 // pred_check_branch
      %67 = sbr.rel (0) target = $region17
    $region16: #{tpu_custom_call.1} parent=1 // pred_region
      %68 = dma.done [#allocation4], 128
    $region17: #{tpu_custom_call.1} parent=1 // pred_fallthru
      _
    %69 = vsyncpa [#allocation3], 1
    %70 = vsyncpa [#allocation4], 1

</llo_original>
